<compile_context>
chip_gen: v7x
topology: tpu7x:2x2x1
jax: 0.10.0
libtpu: 0.0.40
codegen_flags: <defaults>
</compile_context>

<pallas_src>
import functools

import jax
import jax.numpy as jnp
from jax.experimental import pallas as pl
from jax.experimental.pallas import tpu as pltpu


def _round_up(a, b):
    return (a + b - 1) // b * b


def _sublane(dtype):
    return {4: 8, 2: 16, 1: 32}.get(jnp.dtype(dtype).itemsize, 8)


def _device_kind():
    try:
        return getattr(jax.devices()[0], "device_kind", "").lower()
    except Exception:
        return ""


# ---------------------------------------------------------------------------
# Fused kernel: block = (row_tile, full H*W).
# ---------------------------------------------------------------------------
def _simam_fused_kernel(x_ref, o_ref, *, hw, n_eff, lam, lp_tail):
    x_in = x_ref[...]
    xf = x_in.astype(jnp.float32)

    if not lp_tail:
        # Centered variance: matches the two-pass PyTorch reference numerics
        # (no sum(x^2) - hw*mean^2 cancellation) and reuses d*d for both the
        # variance and the energy term.
        mean = jnp.sum(xf, axis=-1, keepdims=True) * (1.0 / hw)
        d = xf - mean
        d2 = d * d
        v = jnp.sum(d2, axis=-1, keepdims=True) * (1.0 / n_eff)
        denom = 4.0 * (v + lam)                       # (tile, 1)
        inv = pl.reciprocal(denom, approx=True)       # EUP seed
        inv = inv * (2.0 - denom * inv)               # one Newton step
        e_inv = d2 * inv + 0.5
        attn = 0.5 * jnp.tanh(0.5 * e_inv) + 0.5      # sigmoid via single tanh
        o_ref[...] = (xf * attn).astype(o_ref.dtype)
    else:
        # bf16 input on a bf16-capable VPU/EUP (v6e/v7x): keep the row
        # statistics in f32, run the per-element tail in the input dtype.
        sum_x = jnp.sum(xf, axis=-1, keepdims=True)
        sum_x2 = jnp.sum(xf * xf, axis=-1, keepdims=True)
        mean = sum_x * (1.0 / hw)
        v = jnp.maximum(sum_x2 - hw * mean * mean, 0.0) * (1.0 / n_eff)
        denom = 4.0 * (v + lam)
        inv = pl.reciprocal(denom, approx=True)
        inv = inv * (2.0 - denom * inv)
        td = x_in.dtype
        d = x_in - mean.astype(td)
        e_inv = d * d * inv.astype(td) + 0.5
        attn = 0.5 * jnp.tanh(0.5 * e_inv) + 0.5
        o_ref[...] = (x_in * attn).astype(o_ref.dtype)


# ---------------------------------------------------------------------------
# Two-pass path (very large H*W): pass 1 = per-row sum / sum-of-squares.
# ---------------------------------------------------------------------------
def _simam_stats_kernel(x_ref, sum_ref, sq_ref, *, hw, tk):
    k = pl.program_id(1)

    @pl.when(k == 0)
    def _():
        sum_ref[...] = jnp.zeros_like(sum_ref)
        sq_ref[...] = jnp.zeros_like(sq_ref)

    x = x_ref[...].astype(jnp.float32)
    # Mask the ragged spatial tail of the last k block (no HBM padding).
    lane = jax.lax.broadcasted_iota(jnp.int32, x.shape, dimension=1) + k * tk
    x = jnp.where(lane < hw, x, 0.0)
    sum_ref[...] += jnp.sum(x, axis=-1, keepdims=True)
    sq_ref[...] += jnp.sum(x * x, axis=-1, keepdims=True)


def _simam_apply_kernel(x_ref, sum_ref, sq_ref, o_ref, *, hw, n_eff, lam, lp_tail):
    x_in = x_ref[...]
    mean = sum_ref[...] * (1.0 / hw)
    # TODO(synk): a third (centered) pass would avoid sum-of-squares
    # cancellation for data with a huge mean offset, at +1 HBM read of x.
    v = jnp.maximum(sq_ref[...] - hw * mean * mean, 0.0) * (1.0 / n_eff)
    denom = 4.0 * (v + lam)
    inv = pl.reciprocal(denom, approx=True)
    inv = inv * (2.0 - denom * inv)

    td = x_in.dtype if lp_tail else jnp.float32
    xt = x_in.astype(td)
    d = xt - mean.astype(td)
    e_inv = d * d * inv.astype(td) + 0.5
    attn = 0.5 * jnp.tanh(0.5 * e_inv) + 0.5
    o_ref[...] = (xt * attn).astype(o_ref.dtype)


# ---------------------------------------------------------------------------
# Wrapper
# ---------------------------------------------------------------------------
def simam(x, coeff_lambda=0.0001, *, max_block_bytes=None):
    """x: (N, C, H, W). Returns X * sigmoid(E_inv), same shape/dtype."""
    assert x.ndim == 4, "shape of X must have 4 dimensions"
    N, C, H, W = x.shape
    hw = H * W
    n = hw - 1
    n_eff = 1 if n == 0 else n
    rows = N * C
    elems = rows * hw

    dtype = x.dtype
    itemsize = jnp.dtype(dtype).itemsize
    sublane = _sublane(dtype)

    kind = _device_kind()
    is_v7 = "7" in kind
    is_v5e = ("v5 lite" in kind) or ("v5e" in kind) or ("v5litepod" in kind)

    # Streaming block budget (f32-equivalent bytes of one x block): larger on
    # the HBM-bound 128-MiB-VMEM parts, smaller on v7x (64 MiB VMEM).
    if max_block_bytes is None:
        max_block_bytes = (2 << 20) if is_v7 else (4 << 20)
    # v7x has 2 TensorCores: guarantee enough row blocks for "parallel" to
    # shard the grid axis across both cores.
    min_row_blocks = 8 if is_v7 else 1
    # bf16 element-wise tail only where the VPU/EUP are natively bf16.
    lp_tail = (dtype == jnp.bfloat16) and not is_v5e

    vmem_cap = (56 << 20) if is_v7 else (100 << 20)
    x2d = x.reshape(rows, hw)

    # ------------------------------------------------------------------ fused
    if (sublane * hw * 4) <= max_block_bytes or hw < 128:
        # TODO(synk): for tiny H*W (<128) one could pack several channels per
        # 128-lane row to recover VPU lane density; HBM traffic is already
        # un-padded here so the win is compute-only.
        tile = (max_block_bytes // (hw * 4)) // sublane * sublane
        tile = max(tile, sublane)
        if min_row_blocks > 1 and rows > sublane:
            tile = min(tile, _round_up(pl.cdiv(rows, min_row_blocks), sublane))
            tile = max(tile, sublane)
        if tile >= rows:
            tile = rows                       # single block == full dim (legal)
        grid = (pl.cdiv(rows, tile),)

        block_in = tile * hw * itemsize
        vmem_need = 4 * block_in + 6 * tile * hw * 4 + (2 << 20)
        vmem_limit = int(min(max(vmem_need, 32 << 20), vmem_cap))

        kernel = functools.partial(
            _simam_fused_kernel, hw=float(hw), n_eff=float(n_eff),
            lam=float(coeff_lambda), lp_tail=lp_tail)

        out2d = pl.pallas_call(
            kernel,
            out_shape=jax.ShapeDtypeStruct((rows, hw), dtype),
            grid=grid,
            in_specs=[pl.BlockSpec((tile, hw), lambda i: (i, 0))],
            out_specs=pl.BlockSpec((tile, hw), lambda i: (i, 0)),
            compiler_params=pltpu.CompilerParams(
                dimension_semantics=("parallel",),
                vmem_limit_bytes=vmem_limit),
            cost_estimate=pl.CostEstimate(
                flops=12 * elems, transcendentals=elems,
                bytes_accessed=2 * elems * itemsize),
        )(x2d)
        return out2d.reshape(N, C, H, W)

    # --------------------------------------------------------------- two-pass
    # Spatial axis too large for a single row block: tile H*W across a second
    # grid axis; costs one extra HBM read of x (unavoidable once a row no
    # longer fits the block budget).
    if rows <= sublane:
        tile = rows
    else:
        tile = max(sublane, min(512, _round_up(pl.cdiv(rows, 8), sublane)))
        if tile >= rows:
            tile = rows
    tk = (max_block_bytes // (tile * 4)) // 128 * 128
    tk = max(tk, 128)
    tk = min(tk, max(128, (hw // 128) * 128))
    grid = (pl.cdiv(rows, tile), pl.cdiv(hw, tk))

    vmem_need = 8 * tile * tk * 4 + (2 << 20)
    vmem_limit = int(min(max(vmem_need, 32 << 20), vmem_cap))

    stats_kernel = functools.partial(_simam_stats_kernel, hw=hw, tk=tk)
    sum_x, sum_x2 = pl.pallas_call(
        stats_kernel,
        out_shape=(jax.ShapeDtypeStruct((rows, 1), jnp.float32),
                   jax.ShapeDtypeStruct((rows, 1), jnp.float32)),
        grid=grid,
        in_specs=[pl.BlockSpec((tile, tk), lambda i, k: (i, k))],
        out_specs=(pl.BlockSpec((tile, 1), lambda i, k: (i, 0)),
                   pl.BlockSpec((tile, 1), lambda i, k: (i, 0))),
        compiler_params=pltpu.CompilerParams(
            dimension_semantics=("parallel", "arbitrary"),
            vmem_limit_bytes=vmem_limit),
        cost_estimate=pl.CostEstimate(
            flops=3 * elems, transcendentals=0,
            bytes_accessed=elems * itemsize + 8 * rows),
    )(x2d)

    apply_kernel = functools.partial(
        _simam_apply_kernel, hw=float(hw), n_eff=float(n_eff),
        lam=float(coeff_lambda), lp_tail=lp_tail)
    out2d = pl.pallas_call(
        apply_kernel,
        out_shape=jax.ShapeDtypeStruct((rows, hw), dtype),
        grid=grid,
        in_specs=[pl.BlockSpec((tile, tk), lambda i, k: (i, k)),
                  pl.BlockSpec((tile, 1), lambda i, k: (i, 0)),
                  pl.BlockSpec((tile, 1), lambda i, k: (i, 0))],
        out_specs=pl.BlockSpec((tile, tk), lambda i, k: (i, k)),
        compiler_params=pltpu.CompilerParams(
            dimension_semantics=("parallel", "parallel"),
            vmem_limit_bytes=vmem_limit),
        cost_estimate=pl.CostEstimate(
            flops=10 * elems, transcendentals=elems,
            bytes_accessed=2 * elems * itemsize + 8 * rows),
    )(x2d, sum_x, sum_x2)
    return out2d.reshape(N, C, H, W)


def simam_ref(x, coeff_lambda=0.0001):
    """Pure-JAX reference mirroring the PyTorch forward."""
    n = x.shape[2] * x.shape[3] - 1
    n = 1 if n == 0 else n
    xf = x.astype(jnp.float32)
    d = (xf - xf.mean(axis=(2, 3), keepdims=True)) ** 2
    v = d.sum(axis=(2, 3), keepdims=True) / n
    e_inv = d / (4.0 * (v + coeff_lambda)) + 0.5
    return (xf * jax.nn.sigmoid(e_inv)).astype(x.dtype)


if __name__ == "__main__":
    key = jax.random.PRNGKey(0)
    k1, k2, k3, k4 = jax.random.split(key, 4)

    # Case 1: lane-aligned spatial size (16*16 = 256 lanes), f32, fused path.
    x = jax.random.normal(k1, (2, 4, 16, 16), dtype=jnp.float32)
    out = jax.block_until_ready(simam(x))
    ref = simam_ref(x)
    assert out.shape == x.shape and out.dtype == x.dtype
    assert jnp.allclose(out, ref, atol=5e-4, rtol=5e-4), "mismatch (aligned)"

    # Case 2: ragged everywhere — 7*7 = 49 lanes, 6 rows — no HBM padding.
    x2 = jax.random.normal(k2, (2, 3, 7, 7), dtype=jnp.float32)
    out2 = jax.block_until_ready(simam(x2))
    ref2 = simam_ref(x2)
    assert out2.shape == x2.shape and out2.dtype == x2.dtype
    assert jnp.allclose(out2, ref2, atol=5e-4, rtol=5e-4), "mismatch (ragged)"

    # Case 3: force the spatially-tiled two-pass path on a small input
    # (hw = 1089 with a 16 KiB block budget; exercises the lane-tail mask).
    x3 = jax.random.normal(k3, (2, 3, 11, 99), dtype=jnp.float32)
    out3 = jax.block_until_ready(simam(x3, max_block_bytes=16 * 1024))
    ref3 = simam_ref(x3)
    assert out3.shape == x3.shape and out3.dtype == x3.dtype
    assert jnp.allclose(out3, ref3, atol=5e-4, rtol=5e-4), "mismatch (two-pass)"

    # Case 4: bf16 input (low-precision tail on v6e/v7x, f32 tail on v5e).
    x4 = jax.random.normal(k4, (2, 4, 16, 16), dtype=jnp.bfloat16)
    out4 = jax.block_until_ready(simam(x4))
    ref4 = simam_ref(x4)
    assert out4.shape == x4.shape and out4.dtype == jnp.bfloat16
    assert jnp.allclose(out4.astype(jnp.float32), ref4.astype(jnp.float32),
                        atol=5e-2, rtol=5e-2), "mismatch (bf16)"

    print("KERNEL_OK")
</pallas_src>

<mosaic_0001>
module attributes {stable_mosaic.version = 11 : i64} {
  func.func @_simam_fused_kernel(%arg0: i32, %arg1: memref<8x256xf32, #tpu.memory_space<vmem>>, %arg2: memref<8x256xf32, #tpu.memory_space<vmem>>) attributes {dimension_semantics = [#tpu.dimension_semantics<parallel>], iteration_bounds = array<i64: 1>, scalar_prefetch = 0 : i64, scratch_operands = 0 : i64, tpu.core_type = #tpu.core_type<tc>, window_params = [{transform_indices = @transform_0, window_bounds = array<i64: 8, 256>}, {transform_indices = @transform_1, window_bounds = array<i64: 8, 256>}]} {
    %c0 = arith.constant 0 : index
    %c0_0 = arith.constant 0 : index
    %0 = vector.load %arg1[%c0, %c0_0] : memref<8x256xf32, #tpu.memory_space<vmem>>, vector<8x256xf32>
    %cst = arith.constant dense<0.000000e+00> : vector<8xf32>
    %1 = vector.multi_reduction <add>, %0, %cst [1] : vector<8x256xf32> to vector<8xf32>
    %2 = vector.shape_cast %1 : vector<8xf32> to vector<8x1xf32>
    %cst_1 = arith.constant 3.906250e-03 : f32
    %3 = vector.broadcast %cst_1 : f32 to vector<8x1xf32>
    %4 = arith.mulf %2, %3 : vector<8x1xf32>
    %5 = vector.broadcast %4 : vector<8x1xf32> to vector<8x256xf32>
    %6 = arith.subf %0, %5 : vector<8x256xf32>
    %7 = arith.mulf %6, %6 : vector<8x256xf32>
    %cst_2 = arith.constant dense<0.000000e+00> : vector<8xf32>
    %8 = vector.multi_reduction <add>, %7, %cst_2 [1] : vector<8x256xf32> to vector<8xf32>
    %9 = vector.shape_cast %8 : vector<8xf32> to vector<8x1xf32>
    %cst_3 = arith.constant 0.00392156886 : f32
    %10 = vector.broadcast %cst_3 : f32 to vector<8x1xf32>
    %11 = arith.mulf %9, %10 : vector<8x1xf32>
    %cst_4 = arith.constant 9.99999974E-5 : f32
    %12 = vector.broadcast %cst_4 : f32 to vector<8x1xf32>
    %13 = arith.addf %11, %12 : vector<8x1xf32>
    %cst_5 = arith.constant 4.000000e+00 : f32
    %14 = vector.broadcast %cst_5 : f32 to vector<8x1xf32>
    %15 = arith.mulf %14, %13 : vector<8x1xf32>
    %16 = tpu.reciprocal %15 {approx = true} : vector<8x1xf32> -> vector<8x1xf32>
    %17 = arith.mulf %15, %16 : vector<8x1xf32>
    %cst_6 = arith.constant 2.000000e+00 : f32
    %18 = vector.broadcast %cst_6 : f32 to vector<8x1xf32>
    %19 = arith.subf %18, %17 : vector<8x1xf32>
    %20 = arith.mulf %16, %19 : vector<8x1xf32>
    %21 = vector.broadcast %20 : vector<8x1xf32> to vector<8x256xf32>
    %22 = arith.mulf %7, %21 : vector<8x256xf32>
    %cst_7 = arith.constant 5.000000e-01 : f32
    %23 = vector.broadcast %cst_7 : f32 to vector<8x256xf32>
    %24 = arith.addf %22, %23 : vector<8x256xf32>
    %cst_8 = arith.constant 5.000000e-01 : f32
    %25 = vector.broadcast %cst_8 : f32 to vector<8x256xf32>
    %26 = arith.mulf %25, %24 : vector<8x256xf32>
    %27 = math.tanh %26 : vector<8x256xf32>
    %cst_9 = arith.constant 5.000000e-01 : f32
    %28 = vector.broadcast %cst_9 : f32 to vector<8x256xf32>
    %29 = arith.mulf %28, %27 : vector<8x256xf32>
    %cst_10 = arith.constant 5.000000e-01 : f32
    %30 = vector.broadcast %cst_10 : f32 to vector<8x256xf32>
    %31 = arith.addf %29, %30 : vector<8x256xf32>
    %32 = arith.mulf %0, %31 : vector<8x256xf32>
    %c0_11 = arith.constant 0 : index
    %c0_12 = arith.constant 0 : index
    %33 = vector.load %arg2[%c0_11, %c0_12] : memref<8x256xf32, #tpu.memory_space<vmem>>, vector<8x256xf32>
    tpu.vector_store %arg2[%c0_11, %c0_12], %32 {strides = array<i32>} : memref<8x256xf32, #tpu.memory_space<vmem>>, vector<8x256xf32>,
    return
  }
  func.func @transform_0(%arg0: i32) -> (i32, i32) {
    %c0_i32 = arith.constant 0 : i32
    %c0_i32_0 = arith.constant 0 : i32
    return %arg0, %c0_i32 : i32, i32
  }
  func.func @transform_1(%arg0: i32) -> (i32, i32) {
    %c0_i32 = arith.constant 0 : i32
    %c0_i32_0 = arith.constant 0 : i32
    return %arg0, %c0_i32 : i32, i32
  }
}

</mosaic_0001>

<llo_original>
// kernel: tpu_custom_call.1
$region0: #{tpu_custom_call.1}
  #allocation0 [shape = 'u32[]', space=smem, size = 0x4, offset = 0x4, fixed_abs, tag = 'smem constant byte address 0x4 - core index']
  #allocation1 [shape = 'u32[144,128]{1,0:T(1,128)}', space=vmem, size = 0x12000, scoped, tag = 'internal scratch']
  %s0 = inlined_call_operand.hbm [shape: f32[8,256], index: 0, kind: input, shape index: {}]
  %s1 = inlined_call_operand.hbm [shape: f32[8,256], index: 1, kind: output, shape index: {}]
  %s2 = sld [smem:[#allocation0]]
  $region18: #{tpu_custom_call.1} parent=0
    _
  %s4 = ssub.s32 1, %s2
  %s5 = scalar_select 0, %s4, %s2
  $region1: #{tpu_custom_call.1} parent=0
    #allocation2 [shape = 'u8[8192]{0}', space=vmem, size = 0x2000, scoped, tag = 'input window, operand 0, single buffered']
    #allocation3 [shape = 's32[1]{0}', space=sflag, size = 0x4, scoped, tag = 'scoped memory for tpu_custom_call.1']
    #allocation4 [shape = 's32[1]{0}', space=sflag, size = 0x4, scoped, tag = 'scoped memory for tpu_custom_call.1']
    #allocation5 [shape = 'u8[8192]{0}', space=vmem, size = 0x2000, scoped, tag = 'output window, operand 0, single buffered']
    %6 = vsyncpa [#allocation3], 0
    %7 = vsyncpa [#allocation4], 0
    // Predicated region
    $region2: #{tpu_custom_call.1} parent=1 // pred_check
      _
    $region3: #{tpu_custom_call.1} parent=1 // pred_check_branch
      %9 = sbr.rel (0) target = $region5
    $region4: #{tpu_custom_call.1} parent=1 // pred_region
      %s11 = ssub.s32 256, 256
      %12 = vsyncadd [#allocation3], %s11
      %s14 = sshll.u32 [#allocation2], 4
      %s15 = int_to_ptr.vmem [resolvable:$true] %s14
      %17 = dma.hbm_to_vmem [thread:$0]  %s0, 256, %s15, [#allocation3]
    $region5: #{tpu_custom_call.1} parent=1 // pred_fallthru
      _
    // Predicated region
    $region6: #{tpu_custom_call.1} parent=1 // pred_check
      _
    $region7: #{tpu_custom_call.1} parent=1 // pred_check_branch
      %19 = sbr.rel (0) target = $region9
    $region8: #{tpu_custom_call.1} parent=1 // pred_region
      %20 = dma.done [#allocation3], 256
    $region9: #{tpu_custom_call.1} parent=1 // pred_fallthru
      _
    %v21 = vld [vmem:[#allocation2] sm:$0xff]
    %v22 = vld [vmem:[#allocation2 + $0x8] sm:$0xff]
    %v23 = vadd.f32 %v21, %v22
    %24 = vadd.xlane.f32.xlu0 %v23
    %v25 = vpop.xlane.xlu0 %24
    %v26 = vmul.f32 %v25, 0.00390625
    %v27 = vsub.f32 %v21, %v26
    %v28 = vsub.f32 %v22, %v26
    %v29 = vmul.f32 %v27, %v27
    %v30 = vmul.f32 %v28, %v28
    %v31 = vadd.f32 %v29, %v30
    %32 = vadd.xlane.f32.xlu0 %v31
    %v33 = vpop.xlane.xlu0 %32
    %v34 = vmul.f32 %v33, 0.003921569
    %v35 = vadd.f32 %v34, 0.0001
    %v36 = vmul.f32 %v35, 4.0
    %v37 = vrcp.pop %v36
    %v38 = vmul.f32 %v36, %v37
    %v39 = vsub.f32 2.0, %v38
    %v40 = vmul.f32 %v37, %v39
    %v41 = vmul.f32 %v29, %v40
    %v42 = vmul.f32 %v30, %v40
    %v43 = vadd.f32 %v41, 0.5
    %v44 = vadd.f32 %v42, 0.5
    %v45 = vmul.f32 %v43, 0.5
    %v46 = vmul.f32 %v44, 0.5
    %v47 = vtanh.pop %v45
    %v48 = vtanh.pop %v46
    %v49 = vmul.f32 %v47, 0.5
    %v50 = vmul.f32 %v48, 0.5
    %v51 = vadd.f32 %v49, 0.5
    %v52 = vadd.f32 %v50, 0.5
    %v53 = vmul.f32 %v21, %v51
    %v54 = vmul.f32 %v22, %v52
    %55 = vst [vmem:[#allocation5] sm:$0xff] %v53
    %56 = vst [vmem:[#allocation5 + $0x8] sm:$0xff] %v54
    // Predicated region
    $region10: #{tpu_custom_call.1} parent=1 // pred_check
      _
    $region11: #{tpu_custom_call.1} parent=1 // pred_check_branch
      %58 = sbr.rel (0) target = $region13
    $region12: #{tpu_custom_call.1} parent=1 // pred_region
      %s60 = ssub.s32 256, 256
      %61 = vsyncadd [#allocation4], %s60
      %s63 = sshll.u32 [#allocation5], 4
      %s64 = int_to_ptr.vmem [resolvable:$true] %s63
      %66 = dma.vmem_to_hbm [thread:$0]  %s64, 256, %s1, [#allocation4]
    $region13: #{tpu_custom_call.1} parent=1 // pred_fallthru
      _
    // Predicated region
    $region14: #{tpu_custom_call.1} parent=1 // pred_check
      _
    $region15: #{tpu_custom_call.1} parent=1 // pred_check_branch
      %68 = sbr.rel (0) target = $region17
    $region16: #{tpu_custom_call.1} parent=1 // pred_region
      %69 = dma.done [#allocation4], 256
    $region17: #{tpu_custom_call.1} parent=1 // pred_fallthru
      _
    %70 = vsyncpa [#allocation3], 1
    %71 = vsyncpa [#allocation4], 1

</llo_original>
